<compile_context>
chip_gen: v7x
topology: tpu7x:2x2x1
jax: 0.10.0
libtpu: 0.0.40
codegen_flags: <defaults>
</compile_context>

<pallas_src>
import functools

import jax
import jax.numpy as jnp
from jax import lax
from jax.experimental import pallas as pl
from jax.experimental.pallas import tpu as pltpu

_NEG_BIG = -1e30  # finite mask fill: no NaNs even for fully-masked rows.


# ---------------------------------------------------------------------------
# Kernel 1: QKV projections for one (batch, row-tile) step.
#   xq/xk/xv_ref : (1, tr, C)   inputs (matmul_dtype)
#   wq/wk/wv_ref : (C, C)       head-stacked projection weights
#   qp/kp/vp_ref : (1, tr, C)   projected outputs (scale folded into q)
# ---------------------------------------------------------------------------
def _qkv_proj_kernel(xq_ref, xk_ref, xv_ref, wq_ref, wk_ref, wv_ref,
                     qp_ref, kp_ref, vp_ref, *, scale):
    qp = jnp.dot(xq_ref[0], wq_ref[...], preferred_element_type=jnp.float32)
    kp = jnp.dot(xk_ref[0], wk_ref[...], preferred_element_type=jnp.float32)
    vp = jnp.dot(xv_ref[0], wv_ref[...], preferred_element_type=jnp.float32)
    qp_ref[0] = (qp * scale).astype(qp_ref.dtype)
    kp_ref[0] = kp.astype(kp_ref.dtype)
    vp_ref[0] = vp.astype(vp_ref.dtype)


# ---------------------------------------------------------------------------
# Kernel 2: flash attention + fused output projection.
# One (batch, q-tile, kv-tile) grid step.
#   q_ref         : (1, tq, C)  projected + pre-scaled queries (matmul_dtype)
#   k_ref / v_ref : (1, tk, C)  projected keys / values        (matmul_dtype)
#   wo_ref        : (C, C)      output projection weight       (matmul_dtype)
#   bo_ref        : (1, C)      output projection bias         (f32)
#   o_ref         : (1, tq, C)  final projected output block
#   m_scr / l_scr : (H, tq, 1)  running max / softmax denominator (f32)
#   acc_scr       : (tq, C)     running unnormalized concat(head_out) (f32)
# ---------------------------------------------------------------------------
def _flash_mha_kernel(q_ref, k_ref, v_ref, wo_ref, bo_ref, o_ref,
                      m_scr, l_scr, acc_scr, *, num_heads, matmul_dtype):
    qi = pl.program_id(1)
    ki = pl.program_id(2)
    tq = q_ref.shape[1]
    tk = k_ref.shape[1]
    C = q_ref.shape[2]
    hs = C // num_heads

    @pl.when(ki == 0)
    def _init():
        m_scr[...] = jnp.full_like(m_scr, _NEG_BIG)
        l_scr[...] = jnp.zeros_like(l_scr)
        acc_scr[...] = jnp.zeros_like(acc_scr)

    # Causal block skipping: this KV block contributes iff its first column is
    # <= the last query row of this q tile (the index_map clamps the DMA too).
    @pl.when(ki * tk < (qi + 1) * tq)
    def _accumulate():
        q = q_ref[0]                                      # (tq, C)
        k = k_ref[0]                                      # (tk, C)
        v = v_ref[0]                                      # (tk, C)
        row = lax.broadcasted_iota(jnp.int32, (tq, tk), 0) + qi * tq
        col = lax.broadcasted_iota(jnp.int32, (tq, tk), 1) + ki * tk
        causal = col <= row

        for h in range(num_heads):                        # static unroll
            sl = slice(h * hs, (h + 1) * hs)
            # scores = qh @ kh^T (q pre-scaled), no explicit transpose, f32 acc.
            s = lax.dot_general(q[:, sl], k[:, sl], (((1,), (1,)), ((), ())),
                                preferred_element_type=jnp.float32)  # (tq, tk)
            s = jnp.where(causal, s, _NEG_BIG)

            m_old = m_scr[h]                              # (tq, 1)
            m_new = jnp.maximum(m_old, jnp.max(s, axis=-1, keepdims=True))
            alpha = jnp.exp(m_old - m_new)
            p = jnp.exp(s - m_new)                        # (tq, tk) f32
            l_scr[h] = alpha * l_scr[h] + jnp.sum(p, axis=-1, keepdims=True)
            pv = jnp.dot(p.astype(matmul_dtype), v[:, sl],
                         preferred_element_type=jnp.float32)          # (tq, hs)
            acc_scr[:, sl] = alpha * acc_scr[:, sl] + pv
            m_scr[h] = m_new

    @pl.when(ki == pl.num_programs(2) - 1)
    def _finalize():
        # Normalize each head, then ONE C-deep output projection (+ bias).
        for h in range(num_heads):
            sl = slice(h * hs, (h + 1) * hs)
            inv_l = pl.reciprocal(l_scr[h], approx=True)              # (tq, 1)
            acc_scr[:, sl] = acc_scr[:, sl] * inv_l
        out = jnp.dot(acc_scr[...].astype(matmul_dtype), wo_ref[...],
                      preferred_element_type=jnp.float32) + bo_ref[...]
        o_ref[0] = out.astype(o_ref.dtype)


def _choose_tile(total, target, align):
    """Largest divisor of `total` <= target, preferring multiples of `align`."""
    if total <= target:
        return total
    fallback = None
    for t in range(min(target, total), 0, -1):
        if total % t == 0:
            if t % align == 0:
                return t
            if fallback is None:
                fallback = t
    return fallback if fallback is not None else total


def multi_head_attention(q, k, v, params, num_heads, *,
                         q_block=256, kv_block=512, matmul_dtype=None):
    """q, k, v: (B, T, C).  params: dict of weights (see init_params).

    matmul_dtype: MXU operand dtype.  Use jnp.bfloat16 on v5e/v6e/v7x for
    native bf16 MXU rates and half the DMA/VMEM bytes (accumulation and
    softmax math stay f32).  Defaults to the input dtype.
    """
    B, T, C = q.shape
    assert C % num_heads == 0, "n_embd must be divisible by num_heads"
    hs = C // num_heads
    scale = float(hs) ** -0.5
    out_dtype = q.dtype
    if matmul_dtype is None:
        matmul_dtype = q.dtype
    matmul_dtype = jnp.dtype(matmul_dtype)

    # Wrapper-boundary casts: operands enter the kernels already in
    # matmul_dtype so DMA bytes and VMEM blocks shrink accordingly.
    def cast(x):
        return x if x.dtype == matmul_dtype else x.astype(matmul_dtype)

    qc, kc, vc = cast(q), cast(k), cast(v)
    wq, wk, wv = cast(params["wq"]), cast(params["wk"]), cast(params["wv"])
    w_out = cast(params["w_out"])
    b_out = params["b_out"].astype(jnp.float32)  # bias added in f32 post-acc

    align = 16 if matmul_dtype == jnp.bfloat16 else 8
    tq = _choose_tile(T, q_block, align)    # query tile
    tk = _choose_tile(T, kv_block, align)   # KV tile (flash axis)
    tr = _choose_tile(T, 512, align)        # projection row tile
    n_q, n_kv, n_r = T // tq, T // tk, T // tr

    itemsize = jnp.dtype(matmul_dtype).itemsize
    out_itemsize = jnp.dtype(out_dtype).itemsize

    # Scoped-VMEM budget from the actual block + scratch footprint
    # (x2 double buffering, x2 headroom for in-kernel temporaries).
    block_bytes = ((tq * C + 2 * tk * C + C * C + C) * itemsize
                   + tq * C * out_itemsize)
    scratch_bytes = (2 * num_heads * tq * 128 + tq * C) * 4
    vmem_limit = int(min(max(4 * (2 * block_bytes + scratch_bytes), 32 << 20),
                         48 << 20))

    # ---- 1) QKV projections (computed once, not per q tile) ---------------
    proj_cost = pl.CostEstimate(
        flops=int(6 * B * T * C * C), transcendentals=0,
        bytes_accessed=int(itemsize * (6 * B * T * C + 3 * C * C)))
    qp, kp, vp = pl.pallas_call(
        functools.partial(_qkv_proj_kernel, scale=scale),
        out_shape=(jax.ShapeDtypeStruct((B, T, C), matmul_dtype),
                   jax.ShapeDtypeStruct((B, T, C), matmul_dtype),
                   jax.ShapeDtypeStruct((B, T, C), matmul_dtype)),
        grid_spec=pltpu.PrefetchScalarGridSpec(
            num_scalar_prefetch=0,
            grid=(B, n_r),
            in_specs=[
                pl.BlockSpec((1, tr, C), lambda b, r: (b, r, 0)),
                pl.BlockSpec((1, tr, C), lambda b, r: (b, r, 0)),
                pl.BlockSpec((1, tr, C), lambda b, r: (b, r, 0)),
                pl.BlockSpec((C, C), lambda b, r: (0, 0)),
                pl.BlockSpec((C, C), lambda b, r: (0, 0)),
                pl.BlockSpec((C, C), lambda b, r: (0, 0)),
            ],
            out_specs=[
                pl.BlockSpec((1, tr, C), lambda b, r: (b, r, 0)),
                pl.BlockSpec((1, tr, C), lambda b, r: (b, r, 0)),
                pl.BlockSpec((1, tr, C), lambda b, r: (b, r, 0)),
            ]),
        compiler_params=pltpu.CompilerParams(
            dimension_semantics=("parallel", "parallel"),
            vmem_limit_bytes=vmem_limit),
        cost_estimate=proj_cost,
    )(qc, kc, vc, wq, wk, wv)

    # ---- 2) Flash attention + fused output projection ---------------------
    def q_map(b, qi, ki):
        return (b, qi, 0)

    def kv_map(b, qi, ki):
        # Clamp to the last causally relevant KV block: Pallas skips the DMA
        # when the block index repeats, so fully-masked blocks cost nothing.
        last = ((qi + 1) * tq - 1) // tk
        return (b, jnp.minimum(ki, last), 0)

    def const_map(b, qi, ki):
        return (0, 0)

    attn_cost = pl.CostEstimate(
        flops=int(2 * B * T * T * C + 2 * B * T * C * C),
        transcendentals=int(B * num_heads * T * T // 2),
        bytes_accessed=int(itemsize * (3 * B * T * C + C * C + C)
                           + out_itemsize * B * T * C))

    kernel = functools.partial(_flash_mha_kernel, num_heads=num_heads,
                               matmul_dtype=matmul_dtype)
    return pl.pallas_call(
        kernel,
        out_shape=jax.ShapeDtypeStruct((B, T, C), out_dtype),
        grid_spec=pltpu.PrefetchScalarGridSpec(
            num_scalar_prefetch=0,
            grid=(B, n_q, n_kv),
            in_specs=[
                pl.BlockSpec((1, tq, C), q_map),      # projected q tile
                pl.BlockSpec((1, tk, C), kv_map),     # projected k tile
                pl.BlockSpec((1, tk, C), kv_map),     # projected v tile
                pl.BlockSpec((C, C), const_map),      # W_out
                pl.BlockSpec((1, C), const_map),      # b_out
            ],
            out_specs=pl.BlockSpec((1, tq, C), q_map),
            scratch_shapes=[
                pltpu.VMEM((num_heads, tq, 1), jnp.float32),  # running max
                pltpu.VMEM((num_heads, tq, 1), jnp.float32),  # running denom
                pltpu.VMEM((tq, C), jnp.float32),             # running concat(head_out)
            ]),
        compiler_params=pltpu.CompilerParams(
            dimension_semantics=("parallel", "parallel", "arbitrary"),
            vmem_limit_bytes=vmem_limit),
        cost_estimate=attn_cost,
    )(qp, kp, vp, w_out, b_out)


def init_params(key, num_heads, n_embd):
    """wq/wk/wv: (C, C) with columns [h*hs:(h+1)*hs] = head h's (C, hs) weight."""
    k1, k2, k3, k4, k5 = jax.random.split(key, 5)
    scale = 0.02
    return {
        "wq": scale * jax.random.normal(k1, (n_embd, n_embd), jnp.float32),
        "wk": scale * jax.random.normal(k2, (n_embd, n_embd), jnp.float32),
        "wv": scale * jax.random.normal(k3, (n_embd, n_embd), jnp.float32),
        "w_out": scale * jax.random.normal(k4, (n_embd, n_embd), jnp.float32),
        "b_out": scale * jax.random.normal(k5, (1, n_embd), jnp.float32),
    }


def _reference(q, k, v, params, num_heads):
    """Pure-JAX reference mirroring the PyTorch forward."""
    B, T, C = q.shape
    hs = C // num_heads
    mask = jnp.tril(jnp.ones((T, T), bool))
    heads = []
    for h in range(num_heads):
        sl = slice(h * hs, (h + 1) * hs)
        qh = q @ params["wq"][:, sl]
        kh = k @ params["wk"][:, sl]
        vh = v @ params["wv"][:, sl]
        s = (qh @ jnp.swapaxes(kh, -1, -2)) * (hs ** -0.5)
        s = jnp.where(mask, s, -jnp.inf)
        w = jax.nn.softmax(s, axis=-1)
        heads.append(w @ vh)
    concat = jnp.concatenate(heads, axis=-1)
    return concat @ params["w_out"] + params["b_out"]


if __name__ == "__main__":
    # Small shapes: batch=2, seq=8, n_embd=32, num_heads=4 (head_size=8).
    B, T, C, H = 2, 8, 32, 4
    key = jax.random.PRNGKey(0)
    kq, kk, kv_, kp = jax.random.split(key, 4)
    q = jax.random.normal(kq, (B, T, C), jnp.float32)
    k = jax.random.normal(kk, (B, T, C), jnp.float32)
    v = jax.random.normal(kv_, (B, T, C), jnp.float32)
    params = init_params(kp, H, C)

    ref = _reference(q, k, v, params, H)

    # f32 operands: strict check against the f32 reference.
    out = multi_head_attention(q, k, v, params, H)
    out = jax.block_until_ready(out)
    assert out.shape == (B, T, C)
    assert jnp.allclose(out, ref, atol=1e-4, rtol=1e-4), float(
        jnp.max(jnp.abs(out - ref)))

    # bf16 MXU operands (recommended on v5e/v6e/v7x): loose check.
    out_bf16 = multi_head_attention(q, k, v, params, H,
                                    matmul_dtype=jnp.bfloat16)
    out_bf16 = jax.block_until_ready(out_bf16)
    assert jnp.allclose(out_bf16, ref, atol=1e-1, rtol=1e-1), float(
        jnp.max(jnp.abs(out_bf16 - ref)))

    print("KERNEL_OK")
</pallas_src>

<mosaic_0001>
module attributes {stable_mosaic.version = 11 : i64} {
  func.func @_qkv_proj_kernel(%arg0: i32, %arg1: i32, %arg2: memref<1x8x32xf32, #tpu.memory_space<vmem>>, %arg3: memref<1x8x32xf32, #tpu.memory_space<vmem>>, %arg4: memref<1x8x32xf32, #tpu.memory_space<vmem>>, %arg5: memref<32x32xf32, #tpu.memory_space<vmem>>, %arg6: memref<32x32xf32, #tpu.memory_space<vmem>>, %arg7: memref<32x32xf32, #tpu.memory_space<vmem>>, %arg8: memref<1x8x32xf32, #tpu.memory_space<vmem>>, %arg9: memref<1x8x32xf32, #tpu.memory_space<vmem>>, %arg10: memref<1x8x32xf32, #tpu.memory_space<vmem>>) attributes {dimension_semantics = [#tpu.dimension_semantics<parallel>, #tpu.dimension_semantics<parallel>], iteration_bounds = array<i64: 2, 1>, scalar_prefetch = 0 : i64, scratch_operands = 0 : i64, tpu.core_type = #tpu.core_type<tc>, window_params = [{transform_indices = @transform_0, window_bounds = array<i64: 1, 8, 32>}, {transform_indices = @transform_1, window_bounds = array<i64: 1, 8, 32>}, {transform_indices = @transform_2, window_bounds = array<i64: 1, 8, 32>}, {pipeline_mode = #tpu.pipeline_mode<synchronous>, transform_indices = @transform_3, window_bounds = array<i64: 32, 32>}, {pipeline_mode = #tpu.pipeline_mode<synchronous>, transform_indices = @transform_4, window_bounds = array<i64: 32, 32>}, {pipeline_mode = #tpu.pipeline_mode<synchronous>, transform_indices = @transform_5, window_bounds = array<i64: 32, 32>}, {transform_indices = @transform_6, window_bounds = array<i64: 1, 8, 32>}, {transform_indices = @transform_7, window_bounds = array<i64: 1, 8, 32>}, {transform_indices = @transform_8, window_bounds = array<i64: 1, 8, 32>}]} {
    %c0 = arith.constant 0 : index
    %c0_0 = arith.constant 0 : index
    %c0_1 = arith.constant 0 : index
    %0 = vector.load %arg2[%c0, %c0_0, %c0_1] : memref<1x8x32xf32, #tpu.memory_space<vmem>>, vector<1x8x32xf32>
    %1 = vector.shape_cast %0 : vector<1x8x32xf32> to vector<8x32xf32>
    %c0_2 = arith.constant 0 : index
    %c0_3 = arith.constant 0 : index
    %2 = vector.load %arg5[%c0_2, %c0_3] : memref<32x32xf32, #tpu.memory_space<vmem>>, vector<32x32xf32>
    %cst = arith.constant dense<0.000000e+00> : vector<8x32xf32>
    %3 = tpu.matmul %1, %2, %cst {dimension_numbers = #tpu.dot_dimension_numbers<[1], [0], [0], [1], [0, 0, 1, 1], [], []>} : vector<8x32xf32>, vector<32x32xf32>, vector<8x32xf32> -> vector<8x32xf32>
    %c0_4 = arith.constant 0 : index
    %c0_5 = arith.constant 0 : index
    %c0_6 = arith.constant 0 : index
    %4 = vector.load %arg3[%c0_4, %c0_5, %c0_6] : memref<1x8x32xf32, #tpu.memory_space<vmem>>, vector<1x8x32xf32>
    %5 = vector.shape_cast %4 : vector<1x8x32xf32> to vector<8x32xf32>
    %c0_7 = arith.constant 0 : index
    %c0_8 = arith.constant 0 : index
    %6 = vector.load %arg6[%c0_7, %c0_8] : memref<32x32xf32, #tpu.memory_space<vmem>>, vector<32x32xf32>
    %cst_9 = arith.constant dense<0.000000e+00> : vector<8x32xf32>
    %7 = tpu.matmul %5, %6, %cst_9 {dimension_numbers = #tpu.dot_dimension_numbers<[1], [0], [0], [1], [0, 0, 1, 1], [], []>} : vector<8x32xf32>, vector<32x32xf32>, vector<8x32xf32> -> vector<8x32xf32>
    %c0_10 = arith.constant 0 : index
    %c0_11 = arith.constant 0 : index
    %c0_12 = arith.constant 0 : index
    %8 = vector.load %arg4[%c0_10, %c0_11, %c0_12] : memref<1x8x32xf32, #tpu.memory_space<vmem>>, vector<1x8x32xf32>
    %9 = vector.shape_cast %8 : vector<1x8x32xf32> to vector<8x32xf32>
    %c0_13 = arith.constant 0 : index
    %c0_14 = arith.constant 0 : index
    %10 = vector.load %arg7[%c0_13, %c0_14] : memref<32x32xf32, #tpu.memory_space<vmem>>, vector<32x32xf32>
    %cst_15 = arith.constant dense<0.000000e+00> : vector<8x32xf32>
    %11 = tpu.matmul %9, %10, %cst_15 {dimension_numbers = #tpu.dot_dimension_numbers<[1], [0], [0], [1], [0, 0, 1, 1], [], []>} : vector<8x32xf32>, vector<32x32xf32>, vector<8x32xf32> -> vector<8x32xf32>
    %cst_16 = arith.constant 0.353553385 : f32
    %12 = vector.broadcast %cst_16 : f32 to vector<8x32xf32>
    %13 = arith.mulf %3, %12 : vector<8x32xf32>
    %c0_17 = arith.constant 0 : index
    %c0_18 = arith.constant 0 : index
    %c0_19 = arith.constant 0 : index
    %14 = vector.load %arg8[%c0_17, %c0_18, %c0_19] : memref<1x8x32xf32, #tpu.memory_space<vmem>>, vector<1x8x32xf32>
    %15 = vector.shape_cast %14 : vector<1x8x32xf32> to vector<8x32xf32>
    %16 = vector.shape_cast %13 : vector<8x32xf32> to vector<1x8x32xf32>
    tpu.vector_store %arg8[%c0_17, %c0_18, %c0_19], %16 {strides = array<i32>} : memref<1x8x32xf32, #tpu.memory_space<vmem>>, vector<1x8x32xf32>,
    %c0_20 = arith.constant 0 : index
    %c0_21 = arith.constant 0 : index
    %c0_22 = arith.constant 0 : index
    %17 = vector.load %arg9[%c0_20, %c0_21, %c0_22] : memref<1x8x32xf32, #tpu.memory_space<vmem>>, vector<1x8x32xf32>
    %18 = vector.shape_cast %17 : vector<1x8x32xf32> to vector<8x32xf32>
    %19 = vector.shape_cast %7 : vector<8x32xf32> to vector<1x8x32xf32>
    tpu.vector_store %arg9[%c0_20, %c0_21, %c0_22], %19 {strides = array<i32>} : memref<1x8x32xf32, #tpu.memory_space<vmem>>, vector<1x8x32xf32>,
    %c0_23 = arith.constant 0 : index
    %c0_24 = arith.constant 0 : index
    %c0_25 = arith.constant 0 : index
    %20 = vector.load %arg10[%c0_23, %c0_24, %c0_25] : memref<1x8x32xf32, #tpu.memory_space<vmem>>, vector<1x8x32xf32>
    %21 = vector.shape_cast %20 : vector<1x8x32xf32> to vector<8x32xf32>
    %22 = vector.shape_cast %11 : vector<8x32xf32> to vector<1x8x32xf32>
    tpu.vector_store %arg10[%c0_23, %c0_24, %c0_25], %22 {strides = array<i32>} : memref<1x8x32xf32, #tpu.memory_space<vmem>>, vector<1x8x32xf32>,
    return
  }
  func.func @transform_0(%arg0: i32, %arg1: i32) -> (i32, i32, i32) {
    %c0_i32 = arith.constant 0 : i32
    %c0_i32_0 = arith.constant 0 : i32
    return %arg0, %arg1, %c0_i32 : i32, i32, i32
  }
  func.func @transform_1(%arg0: i32, %arg1: i32) -> (i32, i32, i32) {
    %c0_i32 = arith.constant 0 : i32
    %c0_i32_0 = arith.constant 0 : i32
    return %arg0, %arg1, %c0_i32 : i32, i32, i32
  }
  func.func @transform_2(%arg0: i32, %arg1: i32) -> (i32, i32, i32) {
    %c0_i32 = arith.constant 0 : i32
    %c0_i32_0 = arith.constant 0 : i32
    return %arg0, %arg1, %c0_i32 : i32, i32, i32
  }
  func.func @transform_3(%arg0: i32, %arg1: i32) -> (i32, i32) {
    %c0_i32 = arith.constant 0 : i32
    %c0_i32_0 = arith.constant 0 : i32
    %c0_i32_1 = arith.constant 0 : i32
    return %c0_i32, %c0_i32_0 : i32, i32
  }
  func.func @transform_4(%arg0: i32, %arg1: i32) -> (i32, i32) {
    %c0_i32 = arith.constant 0 : i32
    %c0_i32_0 = arith.constant 0 : i32
    %c0_i32_1 = arith.constant 0 : i32
    return %c0_i32, %c0_i32_0 : i32, i32
  }
  func.func @transform_5(%arg0: i32, %arg1: i32) -> (i32, i32) {
    %c0_i32 = arith.constant 0 : i32
    %c0_i32_0 = arith.constant 0 : i32
    %c0_i32_1 = arith.constant 0 : i32
    return %c0_i32, %c0_i32_0 : i32, i32
  }
  func.func @transform_6(%arg0: i32, %arg1: i32) -> (i32, i32, i32) {
    %c0_i32 = arith.constant 0 : i32
    %c0_i32_0 = arith.constant 0 : i32
    return %arg0, %arg1, %c0_i32 : i32, i32, i32
  }
  func.func @transform_7(%arg0: i32, %arg1: i32) -> (i32, i32, i32) {
    %c0_i32 = arith.constant 0 : i32
    %c0_i32_0 = arith.constant 0 : i32
    return %arg0, %arg1, %c0_i32 : i32, i32, i32
  }
  func.func @transform_8(%arg0: i32, %arg1: i32) -> (i32, i32, i32) {
    %c0_i32 = arith.constant 0 : i32
    %c0_i32_0 = arith.constant 0 : i32
    return %arg0, %arg1, %c0_i32 : i32, i32, i32
  }
}

</mosaic_0001>

<llo_original>
// kernel: tpu_custom_call.1
$region0: #{tpu_custom_call.1}
  #allocation0 [shape = 'u32[]', space=smem, size = 0x4, offset = 0x4, fixed_abs, tag = 'smem constant byte address 0x4 - core index']
  #allocation1 [shape = 'u32[144,128]{1,0:T(1,128)}', space=vmem, size = 0x12000, scoped, tag = 'internal scratch']
  %s0 = inlined_call_operand.hbm [shape: f32[2,8,32], index: 0, kind: input, shape index: {}]
  %s1 = inlined_call_operand.hbm [shape: f32[2,8,32], index: 1, kind: input, shape index: {}]
  %s2 = inlined_call_operand.hbm [shape: f32[2,8,32], index: 2, kind: input, shape index: {}]
  %s3 = inlined_call_operand.hbm [shape: f32[32,32], index: 3, kind: input, shape index: {}]
  %s4 = inlined_call_operand.hbm [shape: f32[32,32], index: 4, kind: input, shape index: {}]
  %s5 = inlined_call_operand.hbm [shape: f32[32,32], index: 5, kind: input, shape index: {}]
  %s6 = inlined_call_operand.hbm [shape: f32[2,8,32], index: 6, kind: output, shape index: {0}]
  %s7 = inlined_call_operand.hbm [shape: f32[2,8,32], index: 7, kind: output, shape index: {1}]
  %s8 = inlined_call_operand.hbm [shape: f32[2,8,32], index: 8, kind: output, shape index: {2}]
  %9 = xla_tuple %s6, %s7, %s8
  %s10 = sld [smem:[#allocation0]]
  $region97: #{tpu_custom_call.1} parent=0
    _
  %s12 = ssub.s32 1, %s10
  %s13 = scalar_select 0, %s12, %s10
  $region1: #{tpu_custom_call.1} parent=0
    #allocation2 [shape = 'u8[8192]{0}', space=vmem, size = 0x2000, scoped, tag = 'input window, operand 0']
    #allocation3 [shape = 's32[2]{0}', space=sflag, size = 0x8, scoped, tag = 'scoped memory for tpu_custom_call.1']
    #allocation4 [shape = 's32[2]{0}', space=sflag, size = 0x8, scoped, tag = 'scoped memory for tpu_custom_call.1']
    #allocation5 [shape = 'u8[8192]{0}', space=vmem, size = 0x2000, scoped, tag = 'input window, operand 1']
    #allocation6 [shape = 's32[2]{0}', space=sflag, size = 0x8, scoped, tag = 'scoped memory for tpu_custom_call.1']
    #allocation7 [shape = 'u8[8192]{0}', space=vmem, size = 0x2000, scoped, tag = 'input window, operand 2']
    #allocation8 [shape = 'u8[16384]{0}', space=vmem, size = 0x4000, scoped, tag = 'input window, operand 3, single buffered']
    #allocation9 [shape = 's32[1]{0}', space=sflag, size = 0x4, scoped, tag = 'scoped memory for tpu_custom_call.1']
    #allocation10 [shape = 'u8[16384]{0}', space=vmem, size = 0x4000, scoped, tag = 'input window, operand 4, single buffered']
    #allocation11 [shape = 'u8[16384]{0}', space=vmem, size = 0x4000, scoped, tag = 'input window, operand 5, single buffered']
    #allocation12 [shape = 's32[1]{0}', space=sflag, size = 0x4, scoped, tag = 'scoped memory for tpu_custom_call.1']
    #allocation13 [shape = 'u8[8192]{0}', space=vmem, size = 0x2000, scoped, tag = 'output window, operand 0']
    #allocation14 [shape = 'u8[8192]{0}', space=vmem, size = 0x2000, scoped, tag = 'output window, operand 1']
    #allocation15 [shape = 's32[2]{0}', space=sflag, size = 0x8, scoped, tag = 'scoped memory for tpu_custom_call.1']
    #allocation16 [shape = 'u8[8192]{0}', space=vmem, size = 0x2000, scoped, tag = 'output window, operand 2']
    %14 = vsyncpa [#allocation3], 0
    %s15 = scalar_lea.sflag [#allocation3], 1
    %16 = vsyncpa %s15, 0
    %17 = vsyncpa [#allocation6], 0
    %s18 = scalar_lea.sflag [#allocation6], 1
    %19 = vsyncpa %s18, 0
    %20 = vsyncpa [#allocation9], 0
    %21 = vsyncpa [#allocation12], 0
    %22 = vsyncpa [#allocation4], 0
    %s23 = scalar_lea.sflag [#allocation4], 1
    %24 = vsyncpa %s23, 0
    %25 = vsyncpa [#allocation15], 0
    %s26 = scalar_lea.sflag [#allocation15], 1
    %27 = vsyncpa %s26, 0
    loop: start=0, step=1, limit=4
    $region2: #{tpu_custom_call.1} parent=1 // loop_pre_header
      _
    $region3: #{tpu_custom_call.1} parent=1 // loop_header
      %s29 = sphi 0, %s33
      %p30 = scmp.ge.s32.totalorder %s29, 4
      %s36 = sphi 0, %s48
      %s37 = sphi 0, %s44
      %s38 = sphi 0, %s36
      %s39 = sphi 0, %s37
      %s40 = sphi 0, %s38
      %s41 = sphi 0, %s39
      %s53 = sphi 0, %s55
      %s56 = sphi 0, %s53
      %s57 = sphi 0, %s56
      %s73 = sphi 0, %s57
      %s81 = sphi 0, %s83
      %s84 = sphi 0, %s81
      %s85 = sphi 0, %s84
      %s101 = sphi 0, %s85
      %s109 = sphi 0, %s111
      %s112 = sphi 0, %s109
      %s113 = sphi 0, %s112
      %s129 = sphi 0, %s113
      %s133 = sphi 0, %s133
      %s135 = sphi 0, %s133
      %s136 = sphi 0, %s135
      %s150 = sphi 0, %s136
      %s154 = sphi 0, %s154
      %s156 = sphi 0, %s154
      %s157 = sphi 0, %s156
      %s171 = sphi 0, %s157
      %s175 = sphi 0, %s175
      %s177 = sphi 0, %s175
      %s178 = sphi 0, %s177
      %s192 = sphi 0, %s178
      %s200 = sphi 0, %s202
      %s203 = sphi 0, %s200
      %s204 = sphi 0, %s203
      %s220 = sphi 0, %s204
      %s228 = sphi 0, %s230
      %s231 = sphi 0, %s228
      %s232 = sphi 0, %s231
      %s248 = sphi 0, %s232
      %s256 = sphi 0, %s258
      %s259 = sphi 0, %s256
      %s260 = sphi 0, %s259
      %s276 = sphi 0, %s260
    $region4: #{tpu_custom_call.1} parent=1 // loop_header_branch
      %32 = sbr.rel (%p30) target = $region8
    $region5: #{tpu_custom_call.1} parent=1 // loop_body
      %s34 = ssub.s32 %s29, 1
      %s35 = ssub.s32 %s29, 2
      %s42 = sadd.s32 1, %s37
      %p43 = scmp.ge.s32.totalorder %s42, 1
      %s44 = scalar_select %p43, 0, %s42
      %s45 = sadd.s32 1, %s36
      %s46 = scalar_select %p43, %s45, %s36
      %p47 = scmp.ge.s32.totalorder %s46, 2
      %s48 = scalar_select %p47, 0, %s46
      %s49 = ssub.s32 %s36, %s48
      %s50 = ssub.s32 %s37, %s44
      %s51 = sor.u32 %s49, %s50
      %p52 = scmp.eq.s32.totalorder %s51, 0
      %s54 = sadd.s32 %s53, 1
      %s55 = scalar_select %p52, %s53, %s54
      %p58 = pneg %p52
      %p59 = scmp.eq.s32.totalorder %s29, 1
      %p60 = por %p58, %p59
      %p61 = scmp.ne.s32.totalorder %s53, %s56
      %p62 = scmp.eq.s32.totalorder %s29, 0
      %p63 = por %p61, %p62
      %p64 = scmp.ne.s32.totalorder %s53, %s56
      %p65 = scmp.eq.s32.totalorder %s34, 1
      %p66 = por %p64, %p65
      %p67 = scmp.ne.s32.totalorder %s56, %s57
      %p68 = scmp.eq.s32.totalorder %s34, 0
      %p69 = por %p67, %p68
      %p70 = scmp.ne.s32.totalorder %s56, %s57
      %p71 = scmp.eq.s32.totalorder %s35, 1
      %p72 = por %p70, %p71
      %p74 = scmp.ne.s32.totalorder %s57, %s73
      %p75 = scmp.eq.s32.totalorder %s35, 0
      %p76 = por %p74, %p75
      %s77 = ssub.s32 %s36, %s48
      %s78 = ssub.s32 %s37, %s44
      %s79 = sor.u32 %s77, %s78
      %p80 = scmp.eq.s32.totalorder %s79, 0
      %s82 = sadd.s32 %s81, 1
      %s83 = scalar_select %p80, %s81, %s82
      %p86 = pneg %p80
      %p87 = scmp.eq.s32.totalorder %s29, 1
      %p88 = por %p86, %p87
      %p89 = scmp.ne.s32.totalorder %s81, %s84
      %p90 = scmp.eq.s32.totalorder %s29, 0
      %p91 = por %p89, %p90
      %p92 = scmp.ne.s32.totalorder %s81, %s84
      %p93 = scmp.eq.s32.totalorder %s34, 1
      %p94 = por %p92, %p93
      %p95 = scmp.ne.s32.totalorder %s84, %s85
      %p96 = scmp.eq.s32.totalorder %s34, 0
      %p97 = por %p95, %p96
      %p98 = scmp.ne.s32.totalorder %s84, %s85
      %p99 = scmp.eq.s32.totalorder %s35, 1
      %p100 = por %p98, %p99
      %p102 = scmp.ne.s32.totalorder %s85, %s101
      %p103 = scmp.eq.s32.totalorder %s35, 0
      %p104 = por %p102, %p103
      %s105 = ssub.s32 %s36, %s48
      %s106 = ssub.s32 %s37, %s44
      %s107 = sor.u32 %s105, %s106
      %p108 = scmp.eq.s32.totalorder %s107, 0
      %s110 = sadd.s32 %s109, 1
      %s111 = scalar_select %p108, %s109, %s110
      %p114 = pneg %p108
      %p115 = scmp.eq.s32.totalorder %s29, 1
      %p116 = por %p114, %p115
      %p117 = scmp.ne.s32.totalorder %s109, %s112
      %p118 = scmp.eq.s32.totalorder %s29, 0
      %p119 = por %p117, %p118
      %p120 = scmp.ne.s32.totalorder %s109, %s112
      %p121 = scmp.eq.s32.totalorder %s34, 1
      %p122 = por %p120, %p121
      %p123 = scmp.ne.s32.totalorder %s112, %s113
      %p124 = scmp.eq.s32.totalorder %s34, 0
      %p125 = por %p123, %p124
      %p126 = scmp.ne.s32.totalorder %s112, %s113
      %p127 = scmp.eq.s32.totalorder %s35, 1
      %p128 = por %p126, %p127
      %p130 = scmp.ne.s32.totalorder %s113, %s129
      %p131 = scmp.eq.s32.totalorder %s35, 0
      %p132 = por %p130, %p131
      %s134 = sadd.s32 %s133, 1
      %p137 = scmp.eq.s32.totalorder %s29, 1
      %p138 = scmp.ne.s32.totalorder %s133, %s135
      %p139 = scmp.eq.s32.totalorder %s29, 0
      %p140 = por %p138, %p139
      %p141 = scmp.ne.s32.totalorder %s133, %s135
      %p142 = scmp.eq.s32.totalorder %s34, 1
      %p143 = por %p141, %p142
      %p144 = scmp.ne.s32.totalorder %s135, %s136
      %p145 = scmp.eq.s32.totalorder %s34, 0
      %p146 = por %p144, %p145
      %p147 = scmp.ne.s32.totalorder %s135, %s136
      %p148 = scmp.eq.s32.totalorder %s35, 1
      %p149 = por %p147, %p148
      %p151 = scmp.ne.s32.totalorder %s136, %s150
      %p152 = scmp.eq.s32.totalorder %s35, 0
      %p153 = por %p151, %p152
      %s155 = sadd.s32 %s154, 1
      %p158 = scmp.eq.s32.totalorder %s29, 1
      %p159 = scmp.ne.s32.totalorder %s154, %s156
      %p160 = scmp.eq.s32.totalorder %s29, 0
      %p161 = por %p159, %p160
      %p162 = scmp.ne.s32.totalorder %s154, %s156
      %p163 = scmp.eq.s32.totalorder %s34, 1
      %p164 = por %p162, %p163
      %p165 = scmp.ne.s32.totalorder %s156, %s157
      %p166 = scmp.eq.s32.totalorder %s34, 0
      %p167 = por %p165, %p166
      %p168 = scmp.ne.s32.totalorder %s156, %s157
      %p169 = scmp.eq.s32.totalorder %s35, 1
      %p170 = por %p168, %p169
      %p172 = scmp.ne.s32.totalorder %s157, %s171
      %p173 = scmp.eq.s32.totalorder %s35, 0
      %p174 = por %p172, %p173
      %s176 = sadd.s32 %s175, 1
      %p179 = scmp.eq.s32.totalorder %s29, 1
      %p180 = scmp.ne.s32.totalorder %s175, %s177
      %p181 = scmp.eq.s32.totalorder %s29, 0
      %p182 = por %p180, %p181
      %p183 = scmp.ne.s32.totalorder %s175, %s177
      %p184 = scmp.eq.s32.totalorder %s34, 1
      %p185 = por %p183, %p184
      %p186 = scmp.ne.s32.totalorder %s177, %s178
      %p187 = scmp.eq.s32.totalorder %s34, 0
      %p188 = por %p186, %p187
      %p189 = scmp.ne.s32.totalorder %s177, %s178
      %p190 = scmp.eq.s32.totalorder %s35, 1
      %p191 = por %p189, %p190
      %p193 = scmp.ne.s32.totalorder %s178, %s192
      %p194 = scmp.eq.s32.totalorder %s35, 0
      %p195 = por %p193, %p194
      %s196 = ssub.s32 %s36, %s48
      %s197 = ssub.s32 %s37, %s44
      %s198 = sor.u32 %s196, %s197
      %p199 = scmp.eq.s32.totalorder %s198, 0
      %s201 = sadd.s32 %s200, 1
      %s202 = scalar_select %p199, %s200, %s201
      %p205 = pneg %p199
      %p206 = scmp.eq.s32.totalorder %s29, 1
      %p207 = por %p205, %p206
      %p208 = scmp.ne.s32.totalorder %s200, %s203
      %p209 = scmp.eq.s32.totalorder %s29, 0
      %p210 = por %p208, %p209
      %p211 = scmp.ne.s32.totalorder %s200, %s203
      %p212 = scmp.eq.s32.totalorder %s34, 1
      %p213 = por %p211, %p212
      %p214 = scmp.ne.s32.totalorder %s203, %s204
      %p215 = scmp.eq.s32.totalorder %s34, 0
      %p216 = por %p214, %p215
      %p217 = scmp.ne.s32.totalorder %s203, %s204
      %p218 = scmp.eq.s32.totalorder %s35, 1
      %p219 = por %p217, %p218
      %p221 = scmp.ne.s32.totalorder %s204, %s220
      %p222 = scmp.eq.s32.totalorder %s35, 0
      %p223 = por %p221, %p222
      %s224 = ssub.s32 %s36, %s48
      %s225 = ssub.s32 %s37, %s44
      %s226 = sor.u32 %s224, %s225
      %p227 = scmp.eq.s32.totalorder %s226, 0
      %s229 = sadd.s32 %s228, 1
      %s230 = scalar_select %p227, %s228, %s229
      %p233 = pneg %p227
      %p234 = scmp.eq.s32.totalorder %s29, 1
      %p235 = por %p233, %p234
      %p236 = scmp.ne.s32.totalorder %s228, %s231
      %p237 = scmp.eq.s32.totalorder %s29, 0
      %p238 = por %p236, %p237
      %p239 = scmp.ne.s32.totalorder %s228, %s231
      %p240 = scmp.eq.s32.totalorder %s34, 1
      %p241 = por %p239, %p240
      %p242 = scmp.ne.s32.totalorder %s231, %s232
      %p243 = scmp.eq.s32.totalorder %s34, 0
      %p244 = por %p242, %p243
      %p245 = scmp.ne.s32.totalorder %s231, %s232
      %p246 = scmp.eq.s32.totalorder %s35, 1
      %p247 = por %p245, %p246
      %p249 = scmp.ne.s32.totalorder %s232, %s248
      %p250 = scmp.eq.s32.totalorder %s35, 0
      %p251 = por %p249, %p250
      %s252 = ssub.s32 %s36, %s48
      %s253 = ssub.s32 %s37, %s44
      %s254 = sor.u32 %s252, %s253
      %p255 = scmp.eq.s32.totalorder %s254, 0
      %s257 = sadd.s32 %s256, 1
      %s258 = scalar_select %p255, %s256, %s257
      %p261 = pneg %p255
      %p262 = scmp.eq.s32.totalorder %s29, 1
      %p263 = por %p261, %p262
      %p264 = scmp.ne.s32.totalorder %s256, %s259
      %p265 = scmp.eq.s32.totalorder %s29, 0
      %p266 = por %p264, %p265
      %p267 = scmp.ne.s32.totalorder %s256, %s259
      %p268 = scmp.eq.s32.totalorder %s34, 1
      %p269 = por %p267, %p268
      %p270 = scmp.ne.s32.totalorder %s259, %s260
      %p271 = scmp.eq.s32.totalorder %s34, 0
      %p272 = por %p270, %p271
      %p273 = scmp.ne.s32.totalorder %s259, %s260
      %p274 = scmp.eq.s32.totalorder %s35, 1
      %p275 = por %p273, %p274
      %p277 = scmp.ne.s32.totalorder %s260, %s276
      %p278 = scmp.eq.s32.totalorder %s35, 0
      %p279 = por %p277, %p278
      %p280 = scmp.le.s32.totalorder 1, %s29
      %p281 = scmp.lt.s32.totalorder %s29, 3
      %p282 = pnand %p280, %p281
      %p283 = pneg %p282
      // Predicated region
      $region9: #{tpu_custom_call.1} parent=5 // pred_check
        _
      $region10: #{tpu_custom_call.1} parent=5 // pred_check_branch
        %285 = sbr.rel (%p282) target = $region12
      $region11: #{tpu_custom_call.1} parent=5 // pred_region
        %s286 = ssub.s32 %s29, 1
        // Predicated region
        $region13: #{tpu_custom_call.1} parent=11 // pred_check
          %p287 = pneg %p146
        $region14: #{tpu_custom_call.1} parent=11 // pred_check_branch
          %289 = sbr.rel (%p287) target = $region16
        $region15: #{tpu_custom_call.1} parent=11 // pred_region
          %s291 = ssub.s32 512, 512
          %292 = vsyncadd [#allocation9], %s291
          %s293 = sshll.u32 [#allocation8], 4
          %s294 = int_to_ptr.vmem [resolvable:$true] %s293
          %299 = dma.hbm_to_vmem [thread:$0]  %s3, 512, %s294, [#allocation9], 128, 128, 8
        $region16: #{tpu_custom_call.1} parent=11 // pred_fallthru
          _
        // Predicated region
        $region17: #{tpu_custom_call.1} parent=11 // pred_check
          %p300 = pneg %p167
        $region18: #{tpu_custom_call.1} parent=11 // pred_check_branch
          %302 = sbr.rel (%p300) target = $region20
        $region19: #{tpu_custom_call.1} parent=11 // pred_region
          %s304 = ssub.s32 512, 512
          %305 = vsyncadd [#allocation9], %s304
          %s306 = sshll.u32 [#allocation10], 4
          %s307 = int_to_ptr.vmem [resolvable:$true] %s306
          %312 = dma.hbm_to_vmem [thread:$0]  %s4, 512, %s307, [#allocation9], 128, 128, 8
        $region20: #{tpu_custom_call.1} parent=11 // pred_fallthru
          _
        // Predicated region
        $region21: #{tpu_custom_call.1} parent=11 // pred_check
          %p313 = pneg %p188
        $region22: #{tpu_custom_call.1} parent=11 // pred_check_branch
          %315 = sbr.rel (%p313) target = $region24
        $region23: #{tpu_custom_call.1} parent=11 // pred_region
          %s317 = ssub.s32 512, 512
          %318 = vsyncadd [#allocation12], %s317
          %s319 = sshll.u32 [#allocation11], 4
          %s320 = int_to_ptr.vmem [resolvable:$true] %s319
          %325 = dma.hbm_to_vmem [thread:$0]  %s5, 512, %s320, [#allocation12], 128, 128, 8
        $region24: #{tpu_custom_call.1} parent=11 // pred_fallthru
          _
      $region12: #{tpu_custom_call.1} parent=5 // pred_fallthru
        _
      %p326 = scmp.lt.s32.totalorder %s29, 2
      // Predicated region
      $region25: #{tpu_custom_call.1} parent=5 // pred_check
        %p327 = pneg %p326
      $region26: #{tpu_custom_call.1} parent=5 // pred_check_branch
        %329 = sbr.rel (%p327) target = $region28
      $region27: #{tpu_custom_call.1} parent=5 // pred_region
        // Predicated region
        $region29: #{tpu_custom_call.1} parent=27 // pred_check
          %p330 = pneg %p63
        $region30: #{tpu_custom_call.1} parent=27 // pred_check_branch
          %332 = sbr.rel (%p330) target = $region32
        $region31: #{tpu_custom_call.1} parent=27 // pred_region
          %s333 = sand.u32 %s53, 1
          %s334 = scalar_lea.sflag [#allocation3], %s333
          %s335 = sand.u32 %s53, 1
          %s336 = smul.addr %s335, 8
          %s337 = scalar_lea.vmem [#allocation2], %s336
          %s339 = ssub.s32 128, 128
          %340 = vsyncadd %s334, %s339
          %s341 = sadd.s32 %s37, %s36
          %s342 = smul.addr %s341, 128
          %s343 = scalar_lea.hbm %s0, %s342
          %s345 = sshll.u32 %s337, 4
          %s346 = int_to_ptr.vmem [resolvable:$true] %s345
          %348 = dma.hbm_to_vmem [thread:$0]  %s343, 128, %s346, %s334
        $region32: #{tpu_custom_call.1} parent=27 // pred_fallthru
          _
        // Predicated region
        $region33: #{tpu_custom_call.1} parent=27 // pred_check
          %p349 = pneg %p91
        $region34: #{tpu_custom_call.1} parent=27 // pred_check_branch
          %351 = sbr.rel (%p349) target = $region36
        $region35: #{tpu_custom_call.1} parent=27 // pred_region
          %s352 = sand.u32 %s29, 1
          %s353 = scalar_lea.sflag [#allocation6], %s352
          %s354 = sand.u32 %s81, 1
          %s355 = smul.addr %s354, 8
          %s356 = scalar_lea.vmem [#allocation5], %s355
          %s358 = ssub.s32 128, 128
          %359 = vsyncadd %s353, %s358
          %s360 = sadd.s32 %s37, %s36
          %s361 = smul.addr %s360, 128
          %s362 = scalar_lea.hbm %s1, %s361
          %s364 = sshll.u32 %s356, 4
          %s365 = int_to_ptr.vmem [resolvable:$true] %s364
          %367 = dma.hbm_to_vmem [thread:$0]  %s362, 128, %s365, %s353
        $region36: #{tpu_custom_call.1} parent=27 // pred_fallthru
          _
        // Predicated region
        $region37: #{tpu_custom_call.1} parent=27 // pred_check
          %p368 = pneg %p119
        $region38: #{tpu_custom_call.1} parent=27 // pred_check_branch
          %370 = sbr.rel (%p368) target = $region40
        $region39: #{tpu_custom_call.1} parent=27 // pred_region
          %s371 = sand.u32 %s29, 1
          %s372 = scalar_lea.sflag [#allocation6], %s371
          %s373 = sand.u32 %s109, 1
          %s374 = smul.addr %s373, 8
          %s375 = scalar_lea.vmem [#allocation7], %s374
          %s377 = ssub.s32 128, 128
          %378 = vsyncadd %s372, %s377
          %s379 = sadd.s32 %s37, %s36
          %s380 = smul.addr %s379, 128
          %s381 = scalar_lea.hbm %s2, %s380
          %s383 = sshll.u32 %s375, 4
          %s384 = int_to_ptr.vmem [resolvable:$true] %s383
          %386 = dma.hbm_to_vmem [thread:$0]  %s381, 128, %s384, %s372
        $region40: #{tpu_custom_call.1} parent=27 // pred_fallthru
          _
      $region28: #{tpu_custom_call.1} parent=5 // pred_fallthru
        _
      %p387 = scmp.le.s32.totalorder 1, %s29
      %p388 = scmp.lt.s32.totalorder %s29, 3
      %p389 = pnand %p387, %p388
      %p390 = pneg %p389
      // Predicated region
      $region41: #{tpu_custom_call.1} parent=5 // pred_check
        _
      $region42: #{tpu_custom_call.1} parent=5 // pred_check_branch
        %392 = sbr.rel (%p389) target = $region44
      $region43: #{tpu_custom_call.1} parent=5 // pred_region
        %s393 = ssub.s32 %s29, 1
        %s394 = sand.u32 %s56, 1
        %s395 = scalar_lea.sflag [#allocation3], %s394
        %s396 = sand.u32 %s56, 1
        %s397 = smul.addr %s396, 8
        %s398 = scalar_lea.vmem [#allocation2], %s397
        // Predicated region
        $region45: #{tpu_custom_call.1} parent=43 // pred_check
          %p399 = pneg %p69
        $region46: #{tpu_custom_call.1} parent=43 // pred_check_branch
          %401 = sbr.rel (%p399) target = $region48
        $region47: #{tpu_custom_call.1} parent=43 // pred_region
          %402 = dma.done %s395, 128
        $region48: #{tpu_custom_call.1} parent=43 // pred_fallthru
          _
        %s403 = sand.u32 %s34, 1
        %s404 = scalar_lea.sflag [#allocation6], %s403
        %s405 = sand.u32 %s84, 1
        %s406 = smul.addr %s405, 8
        %s407 = scalar_lea.vmem [#allocation5], %s406
        // Predicated region
        $region49: #{tpu_custom_call.1} parent=43 // pred_check
          %p408 = pneg %p97
        $region50: #{tpu_custom_call.1} parent=43 // pred_check_branch
          %410 = sbr.rel (%p408) target = $region52
        $region51: #{tpu_custom_call.1} parent=43 // pred_region
          %411 = dma.done %s404, 128
        $region52: #{tpu_custom_call.1} parent=43 // pred_fallthru
          _
        %s412 = sand.u32 %s34, 1
        %s413 = scalar_lea.sflag [#allocation6], %s412
        %s414 = sand.u32 %s112, 1
        %s415 = smul.addr %s414, 8
        %s416 = scalar_lea.vmem [#allocation7], %s415
        // Predicated region
        $region53: #{tpu_custom_call.1} parent=43 // pred_check
          %p417 = pneg %p125
        $region54: #{tpu_custom_call.1} parent=43 // pred_check_branch
          %419 = sbr.rel (%p417) target = $region56
        $region55: #{tpu_custom_call.1} parent=43 // pred_region
          %420 = dma.done %s413, 128
        $region56: #{tpu_custom_call.1} parent=43 // pred_fallthru
          _
        // Predicated region
        $region57: #{tpu_custom_call.1} parent=43 // pred_check
          %p421 = pneg %p146
        $region58: #{tpu_custom_call.1} parent=43 // pred_check_branch
          %423 = sbr.rel (%p421) target = $region60
        $region59: #{tpu_custom_call.1} parent=43 // pred_region
          %424 = dma.done [#allocation9], 512
        $region60: #{tpu_custom_call.1} parent=43 // pred_fallthru
          _
        // Predicated region
        $region61: #{tpu_custom_call.1} parent=43 // pred_check
          %p425 = pneg %p167
        $region62: #{tpu_custom_call.1} parent=43 // pred_check_branch
          %427 = sbr.rel (%p425) target = $region64
        $region63: #{tpu_custom_call.1} parent=43 // pred_region
          %428 = dma.done [#allocation9], 512
        $region64: #{tpu_custom_call.1} parent=43 // pred_fallthru
          _
        // Predicated region
        $region65: #{tpu_custom_call.1} parent=43 // pred_check
          %p429 = pneg %p188
        $region66: #{tpu_custom_call.1} parent=43 // pred_check_branch
          %431 = sbr.rel (%p429) target = $region68
        $region67: #{tpu_custom_call.1} parent=43 // pred_region
          %432 = dma.done [#allocation12], 512
        $region68: #{tpu_custom_call.1} parent=43 // pred_fallthru
          _
        %s433 = sand.u32 %s56, 1
        %s434 = scalar_lea.sflag [#allocation3], %s433
        %s435 = sand.u32 %s56, 1
        %s436 = smul.addr %s435, 8
        %s437 = scalar_lea.vmem [#allocation2], %s436
        %p438 = pneg %p69
        %p439 = pneg %p66
        %s440 = sand.u32 %s34, 1
        %s441 = scalar_lea.sflag [#allocation6], %s440
        %s442 = sand.u32 %s84, 1
        %s443 = smul.addr %s442, 8
        %s444 = scalar_lea.vmem [#allocation5], %s443
        %p445 = pneg %p97
        %p446 = pneg %p94
        %s447 = sand.u32 %s34, 1
        %s448 = scalar_lea.sflag [#allocation6], %s447
        %s449 = sand.u32 %s112, 1
        %s450 = smul.addr %s449, 8
        %s451 = scalar_lea.vmem [#allocation7], %s450
        %p452 = pneg %p125
        %p453 = pneg %p122
        %p454 = pneg %p146
        %p455 = pneg %p143
        %p456 = pneg %p167
        %p457 = pneg %p164
        %p458 = pneg %p188
        %p459 = pneg %p185
        %p460 = pneg %p216
        %p461 = pneg %p213
        %s462 = sand.u32 %s203, 1
        %s463 = scalar_lea.sflag [#allocation4], %s462
        %s464 = sand.u32 %s203, 1
        %s465 = smul.addr %s464, 8
        %s466 = scalar_lea.vmem [#allocation13], %s465
        %p467 = pneg %p244
        %p468 = pneg %p241
        %s469 = sand.u32 %s34, 1
        %s470 = scalar_lea.sflag [#allocation15], %s469
        %s471 = sand.u32 %s231, 1
        %s472 = smul.addr %s471, 8
        %s473 = scalar_lea.vmem [#allocation14], %s472
        %p474 = pneg %p272
        %p475 = pneg %p269
        %s476 = sand.u32 %s34, 1
        %s477 = scalar_lea.sflag [#allocation15], %s476
        %s478 = sand.u32 %s259, 1
        %s479 = smul.addr %s478, 8
        %s480 = scalar_lea.vmem [#allocation16], %s479
        %v481 = vld [vmem:[%s398] sm:$0xff]
        %v482 = vld [vmem:[#allocation8] sm:$0xff]
        %v483 = vld [vmem:[#allocation8 + $0x8] sm:$0xff]
        %v484 = vld [vmem:[#allocation8 + $0x10] sm:$0xff]
        %v485 = vld [vmem:[#allocation8 + $0x18] sm:$0xff]
        %vm486 = vcmask 261120
        %v488 = vsel %vm486, %v481, 0
        %490 = vmatprep.subr.mxu0 0.0
        %491 = vmatpush1.msra.mxu0 %v482
        %492 = vmatprep.subr.mxu0 0.0
        %493 = vmatpush1.msra.mxu0 %v483
        %494 = vmatprep.subr.mxu0 0.0
        %495 = vmatpush1.msra.mxu0 %v484
        %496 = vmatprep.subr.mxu0 0.0
        %497 = vmatpush1.msra.mxu0 %v485
        %498 = vmatprep.subr.mxu0 0.0
        %499 = vmatpush1.msra.mxu0 0.0
        %500 = vmatprep.subr.mxu0 0.0
        %501 = vmatpush1.msra.mxu0 0.0
        %502 = vmatprep.subr.mxu0 0.0
        %503 = vmatpush1.msra.mxu0 0.0
        %504 = vmatprep.subr.mxu0 0.0
        %505 = vmatpush1.msra.mxu0 0.0
        %506 = vmatprep.subr.mxu0 0.0
        %507 = vmatpush1.msra.mxu0 0.0
        %508 = vmatprep.subr.mxu0 0.0
        %509 = vmatpush1.msra.mxu0 0.0
        %510 = vmatprep.subr.mxu0 0.0
        %511 = vmatpush1.msra.mxu0 0.0
        %512 = vmatprep.subr.mxu0 0.0
        %513 = vmatpush1.msra.mxu0 0.0
        %514 = vmatprep.subr.mxu0 0.0
        %515 = vmatpush1.msra.mxu0 0.0
        %516 = vmatprep.subr.mxu0 0.0
        %517 = vmatpush1.msra.mxu0 0.0
        %518 = vmatprep.subr.mxu0 0.0
        %519 = vmatpush1.msra.mxu0 0.0
        %520 = vmatprep.subr.mxu0 0.0
        %521 = vmatpush1.msra.mxu0 0.0
        %522 = vmatprep.subr.mxu0 0.0
        %523 = vmatpush1.msra.mxu0 0.0
        %524 = vmatprep.subr.mxu0 0.0
        %525 = vmatpush1.msra.mxu0 0.0
        %526 = vmatprep.subr.mxu0 0.0
        %527 = vmatpush1.msra.mxu0 0.0
        %528 = vmatprep.subr.mxu0 0.0
        %529 = vmatpush1.msra.mxu0 0.0
        %530 = vmatprep.subr.mxu0 0.0
        %531 = vmatpush1.msra.mxu0 0.0
        %532 = vmatprep.subr.mxu0 0.0
        %533 = vmatpush1.msra.mxu0 0.0
        %534 = vmatprep.subr.mxu0 0.0
        %535 = vmatpush1.msra.mxu0 0.0
        %536 = vmatprep.subr.mxu0 0.0
        %537 = vmatpush1.msra.mxu0 0.0
        %538 = vmatprep.subr.mxu0 0.0
        %539 = vmatpush1.msra.mxu0 0.0
        %540 = vmatprep.subr.mxu0 0.0
        %541 = vmatpush1.msra.mxu0 0.0
        %542 = vmatprep.subr.mxu0 0.0
        %543 = vmatpush1.msra.mxu0 0.0
        %544 = vmatprep.subr.mxu0 0.0
        %545 = vmatpush1.msra.mxu0 0.0
        %546 = vmatprep.subr.mxu0 0.0
        %547 = vmatpush1.msra.mxu0 0.0
        %548 = vmatprep.subr.mxu0 0.0
        %549 = vmatpush1.msra.mxu0 0.0
        %550 = vmatprep.subr.mxu0 0.0
        %551 = vmatpush1.msra.mxu0 0.0
        %552 = vmatprep.subr.mxu0 0.0
        %553 = vmatpush1.msra.mxu0 0.0
        %554 = vmatprep.mubr.f32.mxu0 0.0
        %555 = vmatmul.mubr.f32.gmra.mrb[0].mxu0 %v488
        %v556 = vpop.f32.mrb[0].mxu0
        %v557 = vadd.f32 0.0, %v556
        %v558 = vpop.f32.mrb[0].mxu0
        %559 = vdwg.mxu0
        %v560 = vld [vmem:[%s407] sm:$0xff]
        %v561 = vld [vmem:[#allocation10] sm:$0xff]
        %v562 = vld [vmem:[#allocation10 + $0x8] sm:$0xff]
        %v563 = vld [vmem:[#allocation10 + $0x10] sm:$0xff]
        %v564 = vld [vmem:[#allocation10 + $0x18] sm:$0xff]
        %v566 = vsel %vm486, %v560, 0
        %568 = vmatprep.subr.mxu0 0.0
        %569 = vmatpush1.msra.mxu0 %v561
        %570 = vmatprep.subr.mxu0 0.0
        %571 = vmatpush1.msra.mxu0 %v562
        %572 = vmatprep.subr.mxu0 0.0
        %573 = vmatpush1.msra.mxu0 %v563
        %574 = vmatprep.subr.mxu0 0.0
        %575 = vmatpush1.msra.mxu0 %v564
        %576 = vmatprep.subr.mxu0 0.0
        %577 = vmatpush1.msra.mxu0 0.0
        %578 = vmatprep.subr.mxu0 0.0
        %579 = vmatpush1.msra.mxu0 0.0
        %580 = vmatprep.subr.mxu0 0.0
        %581 = vmatpush1.msra.mxu0 0.0
        %582 = vmatprep.subr.mxu0 0.0
        %583 = vmatpush1.msra.mxu0 0.0
        %584 = vmatprep.subr.mxu0 0.0
        %585 = vmatpush1.msra.mxu0 0.0
        %586 = vmatprep.subr.mxu0 0.0
        %587 = vmatpush1.msra.mxu0 0.0
        %588 = vmatprep.subr.mxu0 0.0
        %589 = vmatpush1.msra.mxu0 0.0
        %590 = vmatprep.subr.mxu0 0.0
        %591 = vmatpush1.msra.mxu0 0.0
        %592 = vmatprep.subr.mxu0 0.0
        %593 = vmatpush1.msra.mxu0 0.0
        %594 = vmatprep.subr.mxu0 0.0
        %595 = vmatpush1.msra.mxu0 0.0
        %596 = vmatprep.subr.mxu0 0.0
        %597 = vmatpush1.msra.mxu0 0.0
        %598 = vmatprep.subr.mxu0 0.0
        %599 = vmatpush1.msra.mxu0 0.0
        %600 = vmatprep.subr.mxu0 0.0
        %601 = vmatpush1.msra.mxu0 0.0
        %602 = vmatprep.subr.mxu0 0.0
        %603 = vmatpush1.msra.mxu0 0.0
        %604 = vmatprep.subr.mxu0 0.0
        %605 = vmatpush1.msra.mxu0 0.0
        %606 = vmatprep.subr.mxu0 0.0
        %607 = vmatpush1.msra.mxu0 0.0
        %608 = vmatprep.subr.mxu0 0.0
        %609 = vmatpush1.msra.mxu0 0.0
        %610 = vmatprep.subr.mxu0 0.0
        %611 = vmatpush1.msra.mxu0 0.0
        %612 = vmatprep.subr.mxu0 0.0
        %613 = vmatpush1.msra.mxu0 0.0
        %614 = vmatprep.subr.mxu0 0.0
        %615 = vmatpush1.msra.mxu0 0.0
        %616 = vmatprep.subr.mxu0 0.0
        %617 = vmatpush1.msra.mxu0 0.0
        %618 = vmatprep.subr.mxu0 0.0
        %619 = vmatpush1.msra.mxu0 0.0
        %620 = vmatprep.subr.mxu0 0.0
        %621 = vmatpush1.msra.mxu0 0.0
        %622 = vmatprep.subr.mxu0 0.0
        %623 = vmatpush1.msra.mxu0 0.0
        %624 = vmatprep.subr.mxu0 0.0
        %625 = vmatpush1.msra.mxu0 0.0
        %626 = vmatprep.subr.mxu0 0.0
        %627 = vmatpush1.msra.mxu0 0.0
        %628 = vmatprep.subr.mxu0 0.0
        %629 = vmatpush1.msra.mxu0 0.0
        %630 = vmatprep.subr.mxu0 0.0
        %631 = vmatpush1.msra.mxu0 0.0
        %632 = vmatprep.mubr.f32.mxu0 0.0
        %633 = vmatmul.mubr.f32.gmra.mrb[0].mxu0 %v566
        %v634 = vpop.f32.mrb[0].mxu0
        %v635 = vadd.f32 0.0, %v634
        %v636 = vpop.f32.mrb[0].mxu0
        %637 = vdwg.mxu0
        %v638 = vld [vmem:[%s416] sm:$0xff]
        %v639 = vld [vmem:[#allocation11] sm:$0xff]
        %v640 = vld [vmem:[#allocation11 + $0x8] sm:$0xff]
        %v641 = vld [vmem:[#allocation11 + $0x10] sm:$0xff]
        %v642 = vld [vmem:[#allocation11 + $0x18] sm:$0xff]
        %v644 = vsel %vm486, %v638, 0
        %646 = vmatprep.subr.mxu0 0.0
        %647 = vmatpush1.msra.mxu0 %v639
        %648 = vmatprep.subr.mxu0 0.0
        %649 = vmatpush1.msra.mxu0 %v640
        %650 = vmatprep.subr.mxu0 0.0
        %651 = vmatpush1.msra.mxu0 %v641
        %652 = vmatprep.subr.mxu0 0.0
        %653 = vmatpush1.msra.mxu0 %v642
        %654 = vmatprep.subr.mxu0 0.0
        %655 = vmatpush1.msra.mxu0 0.0
        %656 = vmatprep.subr.mxu0 0.0
        %657 = vmatpush1.msra.mxu0 0.0
        %658 = vmatprep.subr.mxu0 0.0
        %659 = vmatpush1.msra.mxu0 0.0
        %660 = vmatprep.subr.mxu0 0.0
        %661 = vmatpush1.msra.mxu0 0.0
        %662 = vmatprep.subr.mxu0 0.0
        %663 = vmatpush1.msra.mxu0 0.0
        %664 = vmatprep.subr.mxu0 0.0
        %665 = vmatpush1.msra.mxu0 0.0
        %666 = vmatprep.subr.mxu0 0.0
        %667 = vmatpush1.msra.mxu0 0.0
        %668 = vmatprep.subr.mxu0 0.0
        %669 = vmatpush1.msra.mxu0 0.0
        %670 = vmatprep.subr.mxu0 0.0
        %671 = vmatpush1.msra.mxu0 0.0
        %672 = vmatprep.subr.mxu0 0.0
        %673 = vmatpush1.msra.mxu0 0.0
        %674 = vmatprep.subr.mxu0 0.0
        %675 = vmatpush1.msra.mxu0 0.0
        %676 = vmatprep.subr.mxu0 0.0
        %677 = vmatpush1.msra.mxu0 0.0
        %678 = vmatprep.subr.mxu0 0.0
        %679 = vmatpush1.msra.mxu0 0.0
        %680 = vmatprep.subr.mxu0 0.0
        %681 = vmatpush1.msra.mxu0 0.0
        %682 = vmatprep.subr.mxu0 0.0
        %683 = vmatpush1.msra.mxu0 0.0
        %684 = vmatprep.subr.mxu0 0.0
        %685 = vmatpush1.msra.mxu0 0.0
        %686 = vmatprep.subr.mxu0 0.0
        %687 = vmatpush1.msra.mxu0 0.0
        %688 = vmatprep.subr.mxu0 0.0
        %689 = vmatpush1.msra.mxu0 0.0
        %690 = vmatprep.subr.mxu0 0.0
        %691 = vmatpush1.msra.mxu0 0.0
        %692 = vmatprep.subr.mxu0 0.0
        %693 = vmatpush1.msra.mxu0 0.0
        %694 = vmatprep.subr.mxu0 0.0
        %695 = vmatpush1.msra.mxu0 0.0
        %696 = vmatprep.subr.mxu0 0.0
        %697 = vmatpush1.msra.mxu0 0.0
        %698 = vmatprep.subr.mxu0 0.0
        %699 = vmatpush1.msra.mxu0 0.0
        %700 = vmatprep.subr.mxu0 0.0
        %701 = vmatpush1.msra.mxu0 0.0
        %702 = vmatprep.subr.mxu0 0.0
        %703 = vmatpush1.msra.mxu0 0.0
        %704 = vmatprep.subr.mxu0 0.0
        %705 = vmatpush1.msra.mxu0 0.0
        %706 = vmatprep.subr.mxu0 0.0
        %707 = vmatpush1.msra.mxu0 0.0
        %708 = vmatprep.subr.mxu0 0.0
        %709 = vmatpush1.msra.mxu0 0.0
        %710 = vmatprep.mubr.f32.mxu0 0.0
        %711 = vmatmul.mubr.f32.gmra.mrb[0].mxu0 %v644
        %v712 = vpop.f32.mrb[0].mxu0
        %v713 = vadd.f32 0.0, %v712
        %v714 = vpop.f32.mrb[0].mxu0
        %715 = vdwg.mxu0
        %v716 = vmul.f32 %v557, 0.35355338
        %717 = vst.msk [vmem:[%s466] sm:$0xff] %vm486, %v716
        %718 = vst.msk [vmem:[%s473] sm:$0xff] %vm486, %v635
        %719 = vst.msk [vmem:[%s480] sm:$0xff] %vm486, %v713
        %s720 = sand.u32 %s203, 1
        %s721 = scalar_lea.sflag [#allocation4], %s720
        %s722 = sand.u32 %s203, 1
        %s723 = smul.addr %s722, 8
        %s724 = scalar_lea.vmem [#allocation13], %s723
        %s725 = sand.u32 %s34, 1
        %s726 = scalar_lea.sflag [#allocation15], %s725
        %s727 = sand.u32 %s231, 1
        %s728 = smul.addr %s727, 8
        %s729 = scalar_lea.vmem [#allocation14], %s728
        %s730 = sand.u32 %s34, 1
        %s731 = scalar_lea.sflag [#allocation15], %s730
        %s732 = sand.u32 %s259, 1
        %s733 = smul.addr %s732, 8
        %s734 = scalar_lea.vmem [#allocation16], %s733
        // Predicated region
        $region69: #{tpu_custom_call.1} parent=43 // pred_check
          %p735 = pneg %p213
        $region70: #{tpu_custom_call.1} parent=43 // pred_check_branch
          %737 = sbr.rel (%p735) target = $region72
        $region71: #{tpu_custom_call.1} parent=43 // pred_region
          %s739 = ssub.s32 128, 128
          %740 = vsyncadd %s721, %s739
          %s741 = sadd.s32 %s39, %s38
          %s742 = smul.addr %s741, 128
          %s743 = scalar_lea.hbm %s6, %s742
          %s745 = sshll.u32 %s724, 4
          %s746 = int_to_ptr.vmem [resolvable:$true] %s745
          %748 = dma.vmem_to_hbm [thread:$0]  %s746, 128, %s743, %s721
        $region72: #{tpu_custom_call.1} parent=43 // pred_fallthru
          _
        // Predicated region
        $region73: #{tpu_custom_call.1} parent=43 // pred_check
          %p749 = pneg %p241
        $region74: #{tpu_custom_call.1} parent=43 // pred_check_branch
          %751 = sbr.rel (%p749) target = $region76
        $region75: #{tpu_custom_call.1} parent=43 // pred_region
          %s753 = ssub.s32 128, 128
          %754 = vsyncadd %s726, %s753
          %s755 = sadd.s32 %s39, %s38
          %s756 = smul.addr %s755, 128
          %s757 = scalar_lea.hbm %s7, %s756
          %s759 = sshll.u32 %s729, 4
          %s760 = int_to_ptr.vmem [resolvable:$true] %s759
          %762 = dma.vmem_to_hbm [thread:$0]  %s760, 128, %s757, %s726
        $region76: #{tpu_custom_call.1} parent=43 // pred_fallthru
          _
        // Predicated region
        $region77: #{tpu_custom_call.1} parent=43 // pred_check
          %p763 = pneg %p269
        $region78: #{tpu_custom_call.1} parent=43 // pred_check_branch
          %765 = sbr.rel (%p763) target = $region80
        $region79: #{tpu_custom_call.1} parent=43 // pred_region
          %s767 = ssub.s32 128, 128
          %768 = vsyncadd %s731, %s767
          %s769 = sadd.s32 %s39, %s38
          %s770 = smul.addr %s769, 128
          %s771 = scalar_lea.hbm %s8, %s770
          %s773 = sshll.u32 %s734, 4
          %s774 = int_to_ptr.vmem [resolvable:$true] %s773
          %776 = dma.vmem_to_hbm [thread:$0]  %s774, 128, %s771, %s731
        $region80: #{tpu_custom_call.1} parent=43 // pred_fallthru
          _
      $region44: #{tpu_custom_call.1} parent=5 // pred_fallthru
        _
      %p777 = scmp.le.s32.totalorder 2, %s29
      // Predicated region
      $region81: #{tpu_custom_call.1} parent=5 // pred_check
        %p778 = pneg %p777
      $region82: #{tpu_custom_call.1} parent=5 // pred_check_branch
        %780 = sbr.rel (%p778) target = $region84
      $region83: #{tpu_custom_call.1} parent=5 // pred_region
        %s781 = ssub.s32 %s29, 2
        // Predicated region
        $region85: #{tpu_custom_call.1} parent=83 // pred_check
          %p782 = pneg %p219
        $region86: #{tpu_custom_call.1} parent=83 // pred_check_branch
          %784 = sbr.rel (%p782) target = $region88
        $region87: #{tpu_custom_call.1} parent=83 // pred_region
          %s785 = sand.u32 %s204, 1
          %s786 = scalar_lea.sflag [#allocation4], %s785
          %s787 = sand.u32 %s204, 1
          %s788 = smul.addr %s787, 8
          %s789 = scalar_lea.vmem [#allocation13], %s788
          %790 = dma.done %s786, 128
        $region88: #{tpu_custom_call.1} parent=83 // pred_fallthru
          _
        // Predicated region
        $region89: #{tpu_custom_call.1} parent=83 // pred_check
          %p791 = pneg %p247
        $region90: #{tpu_custom_call.1} parent=83 // pred_check_branch
          %793 = sbr.rel (%p791) target = $region92
        $region91: #{tpu_custom_call.1} parent=83 // pred_region
          %s794 = sand.u32 %s35, 1
          %s795 = scalar_lea.sflag [#allocation15], %s794
          %s796 = sand.u32 %s232, 1
          %s797 = smul.addr %s796, 8
          %s798 = scalar_lea.vmem [#allocation14], %s797
          %799 = dma.done %s795, 128
        $region92: #{tpu_custom_call.1} parent=83 // pred_fallthru
          _
        // Predicated region
        $region93: #{tpu_custom_call.1} parent=83 // pred_check
          %p800 = pneg %p275
        $region94: #{tpu_custom_call.1} parent=83 // pred_check_branch
          %802 = sbr.rel (%p800) target = $region96
        $region95: #{tpu_custom_call.1} parent=83 // pred_region
          %s803 = sand.u32 %s35, 1
          %s804 = scalar_lea.sflag [#allocation15], %s803
          %s805 = sand.u32 %s260, 1
          %s806 = smul.addr %s805, 8
          %s807 = scalar_lea.vmem [#allocation16], %s806
          %808 = dma.done %s804, 128
        $region96: #{tpu_custom_call.1} parent=83 // pred_fallthru
          _
      $region84: #{tpu_custom_call.1} parent=5 // pred_fallthru
        _
    $region6: #{tpu_custom_call.1} parent=1 // loop_footer
      %s33 = sadd.s32 1, %s29
    $region7: #{tpu_custom_call.1} parent=1 // loop_footer_branch
      %28 = sbr.rel target = $region3
    $region8: #{tpu_custom_call.1} parent=1 // loop_exit
      _
    %809 = vsyncpa [#allocation3], 1
    %s810 = scalar_lea.sflag [#allocation3], 1
    %811 = vsyncpa %s810, 1
    %812 = vsyncpa [#allocation6], 1
    %s813 = scalar_lea.sflag [#allocation6], 1
    %814 = vsyncpa %s813, 1
    %815 = vsyncpa [#allocation9], 1
    %816 = vsyncpa [#allocation12], 1
    %817 = vsyncpa [#allocation4], 1
    %s818 = scalar_lea.sflag [#allocation4], 1
    %819 = vsyncpa %s818, 1
    %820 = vsyncpa [#allocation15], 1
    %s821 = scalar_lea.sflag [#allocation15], 1
    %822 = vsyncpa %s821, 1

</llo_original>
